<compile_context>
chip_gen: v6e
topology: v6e:2x2x1
jax: 0.10.0
libtpu: 0.0.40
codegen_flags: <defaults>
</compile_context>

<pallas_src>
import jax
import jax.numpy as jnp
from jax.experimental import pallas as pl
from jax.experimental.pallas import tpu as pltpu


def _round_up(n: int, m: int) -> int:
    return ((n + m - 1) // m) * m


def actor_kernel(x_ref, w1_ref, b1_ref, w2_ref, b2_ref, w3_ref, b3_ref,
                 mean_ref):
    # One batch tile: [TM, S] -> [TM, H] -> [TM, H] -> [TM, A]
    wdt = w1_ref.dtype                       # f32, or bf16 if cast_weights used
    x = x_ref[...].astype(wdt)
    h1 = jnp.dot(x, w1_ref[...],
                 preferred_element_type=jnp.float32) + b1_ref[...]
    h1 = jnp.maximum(h1, 0.0)                                  # relu (f32)
    h2 = jnp.dot(h1.astype(wdt), w2_ref[...],
                 preferred_element_type=jnp.float32) + b2_ref[...]
    h2 = jnp.maximum(h2, 0.0)                                  # relu (f32)
    out = jnp.dot(h2.astype(wdt), w3_ref[...],
                  preferred_element_type=jnp.float32) + b3_ref[...]
    mean_ref[...] = out.astype(mean_ref.dtype)


def actor_forward(x, params, *, tm=512):
    """x: [B, S] f32. params from init_params(). Returns (mean, std)."""
    w1, b1, w2, b2, w3, b3, log_std = params
    B, S = x.shape
    H = w1.shape[1]
    A = w3.shape[1]

    # Pad the batch only to the next multiple of 8 sublanes (not to tm); the
    # last grid block may be partial and is clipped by Pallas.
    B_pad = _round_up(max(B, 1), 8)
    x_p = x if B_pad == B else jnp.zeros((B_pad, S), x.dtype).at[:B, :].set(x)

    # Large tiles amortize per-grid-step overhead; when there is enough work,
    # force >= 2 grid steps so the "parallel" batch axis can use both v7x TCs.
    if B_pad >= 16:
        tm = min(tm, _round_up(-(-B_pad // 2), 8))
    else:
        tm = B_pad
    grid = (pl.cdiv(B_pad, tm),)

    const = lambda i: (0, 0)        # weights/biases resident across batch tiles
    mean_p = pl.pallas_call(
        actor_kernel,
        out_shape=jax.ShapeDtypeStruct((B_pad, A), jnp.float32),
        grid=grid,
        in_specs=[
            pl.BlockSpec((tm, S), lambda i: (i, 0)),   # x tile (full S last dim)
            pl.BlockSpec((S, H), const),               # w1
            pl.BlockSpec((1, H), const),               # b1
            pl.BlockSpec((H, H), const),               # w2
            pl.BlockSpec((1, H), const),               # b2
            pl.BlockSpec((H, A), const),               # w3 (full A last dim)
            pl.BlockSpec((1, A), const),               # b3
        ],
        out_specs=pl.BlockSpec((tm, A), lambda i: (i, 0)),
        compiler_params=pltpu.CompilerParams(
            dimension_semantics=("parallel",),         # shards tiles on v7x's 2 TCs
            vmem_limit_bytes=32 << 20,                 # tiny footprint; plenty
        ),
    )(x_p, w1, b1, w2, b2, w3, b3)

    mean = mean_p[:B, :]           # drop padded batch rows (only row slice now)
    # std = exp(log_std).expand_as(mean): x-independent, hoisted out of kernel.
    std = jnp.broadcast_to(jnp.exp(log_std), mean.shape)
    return mean, std


def init_params(key, state_size, action_size, hidden=128):
    """Logical (unpadded) params, roughly nn.Linear default init."""
    k1, k2, k3, k4, k5, k6 = jax.random.split(key, 6)

    def lin(kw, kb, fan_in, fan_out):
        bound = 1.0 / jnp.sqrt(fan_in)
        w = jax.random.uniform(kw, (fan_in, fan_out), jnp.float32, -bound, bound)
        b = jax.random.uniform(kb, (1, fan_out), jnp.float32, -bound, bound)
        return w, b

    w1, b1 = lin(k1, k2, state_size, hidden)
    w2, b2 = lin(k3, k4, hidden, hidden)
    w3, b3 = lin(k5, k6, hidden, action_size)
    log_std = jnp.full((1, action_size), -0.5, jnp.float32)  # torch.ones(A)*-0.5
    return (w1, b1, w2, b2, w3, b3, log_std)


def cast_weights(params, dtype=jnp.bfloat16):
    """Optional: bf16 weight storage (halves weight traffic on v6e/v7x/v5e).

    Biases, log_std and all VPU math stay f32; MXU accumulation stays f32 via
    preferred_element_type. Slight numeric deviation vs the f32 module.
    """
    w1, b1, w2, b2, w3, b3, log_std = params
    return (w1.astype(dtype), b1, w2.astype(dtype), b2,
            w3.astype(dtype), b3, log_std)


if __name__ == "__main__":
    state_size, action_size, batch = 16, 8, 4
    key = jax.random.PRNGKey(0)
    kx, kp, kx2 = jax.random.split(key, 3)

    params = init_params(kp, state_size, action_size)
    w1, b1, w2, b2, w3, b3, log_std = params

    def ref_fwd(xb):
        h = jnp.maximum(xb @ w1 + b1, 0.0)
        h = jnp.maximum(h @ w2 + b2, 0.0)
        m = h @ w3 + b3
        return m, jnp.broadcast_to(jnp.exp(log_std), m.shape)

    fwd = jax.jit(lambda xb: actor_forward(xb, params))

    # Small batch (single grid step).
    x = jax.random.normal(kx, (batch, state_size), jnp.float32)
    mean, std = fwd(x)
    jax.block_until_ready((mean, std))
    mean_r, std_r = ref_fwd(x)
    assert mean.shape == (batch, action_size) and std.shape == (batch, action_size)
    assert jnp.allclose(mean, mean_r, atol=1e-5, rtol=1e-5)
    assert jnp.allclose(std, std_r, atol=1e-6, rtol=1e-6)

    # Larger, non-multiple-of-8 batch: exercises batch padding to 8, a
    # multi-step grid, and a partial (clipped) last block.
    batch2 = 260
    x2 = jax.random.normal(kx2, (batch2, state_size), jnp.float32)
    mean2, std2 = fwd(x2)
    jax.block_until_ready((mean2, std2))
    mean2_r, std2_r = ref_fwd(x2)
    assert mean2.shape == (batch2, action_size)
    assert jnp.allclose(mean2, mean2_r, atol=1e-5, rtol=1e-5)
    assert jnp.allclose(std2, std2_r, atol=1e-6, rtol=1e-6)

    print("KERNEL_OK")
</pallas_src>

<mosaic_0001>
module attributes {stable_mosaic.version = 11 : i64} {
  func.func @actor_kernel(%arg0: i32, %arg1: memref<8x16xf32, #tpu.memory_space<vmem>>, %arg2: memref<16x128xf32, #tpu.memory_space<vmem>>, %arg3: memref<1x128xf32, #tpu.memory_space<vmem>>, %arg4: memref<128x128xf32, #tpu.memory_space<vmem>>, %arg5: memref<1x128xf32, #tpu.memory_space<vmem>>, %arg6: memref<128x8xf32, #tpu.memory_space<vmem>>, %arg7: memref<1x8xf32, #tpu.memory_space<vmem>>, %arg8: memref<8x8xf32, #tpu.memory_space<vmem>>) attributes {dimension_semantics = [#tpu.dimension_semantics<parallel>], iteration_bounds = array<i64: 1>, scalar_prefetch = 0 : i64, scratch_operands = 0 : i64, tpu.core_type = #tpu.core_type<tc>, window_params = [{transform_indices = @transform_0, window_bounds = array<i64: 8, 16>}, {pipeline_mode = #tpu.pipeline_mode<synchronous>, transform_indices = @transform_1, window_bounds = array<i64: 16, 128>}, {pipeline_mode = #tpu.pipeline_mode<synchronous>, transform_indices = @transform_2, window_bounds = array<i64: 1, 128>}, {pipeline_mode = #tpu.pipeline_mode<synchronous>, transform_indices = @transform_3, window_bounds = array<i64: 128, 128>}, {pipeline_mode = #tpu.pipeline_mode<synchronous>, transform_indices = @transform_4, window_bounds = array<i64: 1, 128>}, {pipeline_mode = #tpu.pipeline_mode<synchronous>, transform_indices = @transform_5, window_bounds = array<i64: 128, 8>}, {pipeline_mode = #tpu.pipeline_mode<synchronous>, transform_indices = @transform_6, window_bounds = array<i64: 1, 8>}, {transform_indices = @transform_7, window_bounds = array<i64: 8, 8>}]} {
    %c0 = arith.constant 0 : index
    %c0_0 = arith.constant 0 : index
    %0 = vector.load %arg1[%c0, %c0_0] : memref<8x16xf32, #tpu.memory_space<vmem>>, vector<8x16xf32>
    %c0_1 = arith.constant 0 : index
    %c0_2 = arith.constant 0 : index
    %1 = vector.load %arg2[%c0_1, %c0_2] : memref<16x128xf32, #tpu.memory_space<vmem>>, vector<16x128xf32>
    %cst = arith.constant dense<0.000000e+00> : vector<8x128xf32>
    %2 = tpu.matmul %0, %1, %cst {dimension_numbers = #tpu.dot_dimension_numbers<[1], [0], [0], [1], [0, 0, 1, 1], [], []>} : vector<8x16xf32>, vector<16x128xf32>, vector<8x128xf32> -> vector<8x128xf32>
    %c0_3 = arith.constant 0 : index
    %c0_4 = arith.constant 0 : index
    %3 = vector.load %arg3[%c0_3, %c0_4] : memref<1x128xf32, #tpu.memory_space<vmem>>, vector<1x128xf32>
    %4 = vector.broadcast %3 : vector<1x128xf32> to vector<8x128xf32>
    %5 = arith.addf %2, %4 : vector<8x128xf32>
    %cst_5 = arith.constant 0.000000e+00 : f32
    %6 = vector.broadcast %cst_5 : f32 to vector<8x128xf32>
    %7 = arith.maximumf %5, %6 : vector<8x128xf32>
    %c0_6 = arith.constant 0 : index
    %c0_7 = arith.constant 0 : index
    %8 = vector.load %arg4[%c0_6, %c0_7] : memref<128x128xf32, #tpu.memory_space<vmem>>, vector<128x128xf32>
    %cst_8 = arith.constant dense<0.000000e+00> : vector<8x128xf32>
    %9 = tpu.matmul %7, %8, %cst_8 {dimension_numbers = #tpu.dot_dimension_numbers<[1], [0], [0], [1], [0, 0, 1, 1], [], []>} : vector<8x128xf32>, vector<128x128xf32>, vector<8x128xf32> -> vector<8x128xf32>
    %c0_9 = arith.constant 0 : index
    %c0_10 = arith.constant 0 : index
    %10 = vector.load %arg5[%c0_9, %c0_10] : memref<1x128xf32, #tpu.memory_space<vmem>>, vector<1x128xf32>
    %11 = vector.broadcast %10 : vector<1x128xf32> to vector<8x128xf32>
    %12 = arith.addf %9, %11 : vector<8x128xf32>
    %cst_11 = arith.constant 0.000000e+00 : f32
    %13 = vector.broadcast %cst_11 : f32 to vector<8x128xf32>
    %14 = arith.maximumf %12, %13 : vector<8x128xf32>
    %c0_12 = arith.constant 0 : index
    %c0_13 = arith.constant 0 : index
    %15 = vector.load %arg6[%c0_12, %c0_13] : memref<128x8xf32, #tpu.memory_space<vmem>>, vector<128x8xf32>
    %cst_14 = arith.constant dense<0.000000e+00> : vector<8x8xf32>
    %16 = tpu.matmul %14, %15, %cst_14 {dimension_numbers = #tpu.dot_dimension_numbers<[1], [0], [0], [1], [0, 0, 1, 1], [], []>} : vector<8x128xf32>, vector<128x8xf32>, vector<8x8xf32> -> vector<8x8xf32>
    %c0_15 = arith.constant 0 : index
    %c0_16 = arith.constant 0 : index
    %17 = vector.load %arg7[%c0_15, %c0_16] : memref<1x8xf32, #tpu.memory_space<vmem>>, vector<1x8xf32>
    %18 = vector.broadcast %17 : vector<1x8xf32> to vector<8x8xf32>
    %19 = arith.addf %16, %18 : vector<8x8xf32>
    %c0_17 = arith.constant 0 : index
    %c0_18 = arith.constant 0 : index
    %20 = vector.load %arg8[%c0_17, %c0_18] : memref<8x8xf32, #tpu.memory_space<vmem>>, vector<8x8xf32>
    tpu.vector_store %arg8[%c0_17, %c0_18], %19 {strides = array<i32>} : memref<8x8xf32, #tpu.memory_space<vmem>>, vector<8x8xf32>,
    return
  }
  func.func @transform_0(%arg0: i32) -> (i32, i32) {
    %c0_i32 = arith.constant 0 : i32
    %c0_i32_0 = arith.constant 0 : i32
    return %arg0, %c0_i32 : i32, i32
  }
  func.func @transform_1(%arg0: i32) -> (i32, i32) {
    %c0_i32 = arith.constant 0 : i32
    %c0_i32_0 = arith.constant 0 : i32
    %c0_i32_1 = arith.constant 0 : i32
    return %c0_i32, %c0_i32_0 : i32, i32
  }
  func.func @transform_2(%arg0: i32) -> (i32, i32) {
    %c0_i32 = arith.constant 0 : i32
    %c0_i32_0 = arith.constant 0 : i32
    %c0_i32_1 = arith.constant 0 : i32
    return %c0_i32, %c0_i32_0 : i32, i32
  }
  func.func @transform_3(%arg0: i32) -> (i32, i32) {
    %c0_i32 = arith.constant 0 : i32
    %c0_i32_0 = arith.constant 0 : i32
    %c0_i32_1 = arith.constant 0 : i32
    return %c0_i32, %c0_i32_0 : i32, i32
  }
  func.func @transform_4(%arg0: i32) -> (i32, i32) {
    %c0_i32 = arith.constant 0 : i32
    %c0_i32_0 = arith.constant 0 : i32
    %c0_i32_1 = arith.constant 0 : i32
    return %c0_i32, %c0_i32_0 : i32, i32
  }
  func.func @transform_5(%arg0: i32) -> (i32, i32) {
    %c0_i32 = arith.constant 0 : i32
    %c0_i32_0 = arith.constant 0 : i32
    %c0_i32_1 = arith.constant 0 : i32
    return %c0_i32, %c0_i32_0 : i32, i32
  }
  func.func @transform_6(%arg0: i32) -> (i32, i32) {
    %c0_i32 = arith.constant 0 : i32
    %c0_i32_0 = arith.constant 0 : i32
    %c0_i32_1 = arith.constant 0 : i32
    return %c0_i32, %c0_i32_0 : i32, i32
  }
  func.func @transform_7(%arg0: i32) -> (i32, i32) {
    %c0_i32 = arith.constant 0 : i32
    %c0_i32_0 = arith.constant 0 : i32
    return %arg0, %c0_i32 : i32, i32
  }
}

</mosaic_0001>

<llo_original>
// kernel: _lambda_.1
$region0: #{_lambda_.1}
  #allocation0 [shape = 'u32[]', space=smem, size = 0x4, offset = 0x4, fixed_abs, tag = 'smem constant byte address 0x4 - core index']
  #allocation1 [shape = 'u32[144,128]{1,0:T(1,128)}', space=vmem, size = 0x12000, scoped, tag = 'internal scratch']
  %s0 = inlined_call_operand.vmem [shape: f32[8,16], index: 0, kind: input, shape index: {}]
  %s1 = inlined_call_operand.vmem [shape: f32[16,128], index: 1, kind: input, shape index: {}]
  %s2 = inlined_call_operand.vmem [shape: f32[1,128], index: 2, kind: input, shape index: {}]
  %s3 = inlined_call_operand.hbm [shape: f32[128,128], index: 3, kind: input, shape index: {}]
  %s4 = inlined_call_operand.vmem [shape: f32[1,128], index: 4, kind: input, shape index: {}]
  %s5 = inlined_call_operand.hbm [shape: f32[128,8], index: 5, kind: input, shape index: {}]
  %s6 = inlined_call_operand.vmem [shape: f32[1,8], index: 6, kind: input, shape index: {}]
  %s7 = inlined_call_operand.vmem [shape: f32[8,8], index: 7, kind: output, shape index: {}]
  %s8 = sld [smem:[#allocation0]]
  $region46: #{_lambda_.1} parent=0
    _
  %s10 = ssub.s32 1, %s8
  %s11 = scalar_select 0, %s10, %s8
  $region1: #{_lambda_.1} parent=0
    #allocation2 [shape = 'u8[65536]{0}', space=vmem, size = 0x10000, scoped, tag = 'input window, operand 3, single buffered']
    #allocation3 [shape = 's32[1]{0}', space=sflag, size = 0x4, scoped, tag = 'scoped memory for _lambda_.1']
    #allocation4 [shape = 'u8[65536]{0}', space=vmem, size = 0x10000, scoped, tag = 'input window, operand 5, single buffered']
    #allocation5 [shape = 's32[1]{0}', space=sflag, size = 0x4, scoped, tag = 'scoped memory for _lambda_.1']
    %12 = vsyncpa [#allocation3], 0
    %13 = vsyncpa [#allocation5], 0
    // Predicated region
    $region2: #{_lambda_.1} parent=1 // pred_check
      _
    $region3: #{_lambda_.1} parent=1 // pred_check_branch
      %15 = sbr.rel (0) target = $region5
    $region4: #{_lambda_.1} parent=1 // pred_region
      _
    $region5: #{_lambda_.1} parent=1 // pred_fallthru
      _
    // Predicated region
    $region6: #{_lambda_.1} parent=1 // pred_check
      _
    $region7: #{_lambda_.1} parent=1 // pred_check_branch
      %17 = sbr.rel (0) target = $region9
    $region8: #{_lambda_.1} parent=1 // pred_region
      _
    $region9: #{_lambda_.1} parent=1 // pred_fallthru
      _
    // Predicated region
    $region10: #{_lambda_.1} parent=1 // pred_check
      _
    $region11: #{_lambda_.1} parent=1 // pred_check_branch
      %19 = sbr.rel (0) target = $region13
    $region12: #{_lambda_.1} parent=1 // pred_region
      _
    $region13: #{_lambda_.1} parent=1 // pred_fallthru
      _
    // Predicated region
    $region14: #{_lambda_.1} parent=1 // pred_check
      _
    $region15: #{_lambda_.1} parent=1 // pred_check_branch
      %21 = sbr.rel (0) target = $region17
    $region16: #{_lambda_.1} parent=1 // pred_region
      %s23 = ssub.s32 2048, 2048
      %24 = vsyncadd [#allocation3], %s23
      %s25 = sshll.u32 [#allocation2], 4
      %s26 = int_to_ptr.vmem [resolvable:$true] %s25
      %31 = dma.hbm_to_vmem [thread:$0]  %s3, 2048, %s26, [#allocation3], 128, 128, 8
    $region17: #{_lambda_.1} parent=1 // pred_fallthru
      _
    // Predicated region
    $region18: #{_lambda_.1} parent=1 // pred_check
      _
    $region19: #{_lambda_.1} parent=1 // pred_check_branch
      %33 = sbr.rel (0) target = $region21
    $region20: #{_lambda_.1} parent=1 // pred_region
      _
    $region21: #{_lambda_.1} parent=1 // pred_fallthru
      _
    // Predicated region
    $region22: #{_lambda_.1} parent=1 // pred_check
      _
    $region23: #{_lambda_.1} parent=1 // pred_check_branch
      %35 = sbr.rel (0) target = $region25
    $region24: #{_lambda_.1} parent=1 // pred_region
      %s37 = ssub.s32 2048, 2048
      %38 = vsyncadd [#allocation5], %s37
      %s39 = sshll.u32 [#allocation4], 4
      %s40 = int_to_ptr.vmem [resolvable:$true] %s39
      %45 = dma.hbm_to_vmem [thread:$0]  %s5, 2048, %s40, [#allocation5], 128, 128, 8
    $region25: #{_lambda_.1} parent=1 // pred_fallthru
      _
    // Predicated region
    $region26: #{_lambda_.1} parent=1 // pred_check
      _
    $region27: #{_lambda_.1} parent=1 // pred_check_branch
      %47 = sbr.rel (0) target = $region29
    $region28: #{_lambda_.1} parent=1 // pred_region
      _
    $region29: #{_lambda_.1} parent=1 // pred_fallthru
      _
    // Predicated region
    $region30: #{_lambda_.1} parent=1 // pred_check
      _
    $region31: #{_lambda_.1} parent=1 // pred_check_branch
      %49 = sbr.rel (0) target = $region33
    $region32: #{_lambda_.1} parent=1 // pred_region
      %50 = dma.done [#allocation3], 2048
    $region33: #{_lambda_.1} parent=1 // pred_fallthru
      _
    // Predicated region
    $region34: #{_lambda_.1} parent=1 // pred_check
      _
    $region35: #{_lambda_.1} parent=1 // pred_check_branch
      %52 = sbr.rel (0) target = $region37
    $region36: #{_lambda_.1} parent=1 // pred_region
      %53 = dma.done [#allocation5], 2048
    $region37: #{_lambda_.1} parent=1 // pred_fallthru
      _
    %v54 = vld [vmem:[%s0] sm:$0xff]
    %v55 = vld [vmem:[%s1] sm:$0xff]
    %v56 = vld [vmem:[%s1 + $0x8] sm:$0xff]
    %v57 = vld [vmem:[%s2] sm:$0x1]
    %v59 = vlaneseq
    %v60 = vshrl.u32 %v59, 7
    %v61 = vsub.s32 0, %v60
    %v62 = vrot.slane %v57, %v61
    %vm64 = vcmask 130048
    %v66 = vsel %vm64, %v54, 0
    %68 = vmatprep.subr.mxu0 0.0
    %69 = vmatpush1.msra.mxu0 0.0
    %70 = vmatprep.subr.mxu0 0.0
    %71 = vmatpush1.msra.mxu0 0.0
    %72 = vmatprep.subr.mxu0 0.0
    %73 = vmatpush1.msra.mxu0 0.0
    %74 = vmatprep.subr.mxu0 0.0
    %75 = vmatpush1.msra.mxu0 0.0
    %76 = vmatprep.subr.mxu0 0.0
    %77 = vmatpush1.msra.mxu0 0.0
    %78 = vmatprep.subr.mxu0 0.0
    %79 = vmatpush1.msra.mxu0 0.0
    %80 = vmatprep.subr.mxu0 0.0
    %81 = vmatpush1.msra.mxu0 0.0
    %82 = vmatprep.subr.mxu0 0.0
    %83 = vmatpush1.msra.mxu0 0.0
    %84 = vmatprep.subr.mxu0 0.0
    %85 = vmatpush1.msra.mxu0 0.0
    %86 = vmatprep.subr.mxu0 0.0
    %87 = vmatpush1.msra.mxu0 0.0
    %88 = vmatprep.subr.mxu0 0.0
    %89 = vmatpush1.msra.mxu0 0.0
    %90 = vmatprep.subr.mxu0 0.0
    %91 = vmatpush1.msra.mxu0 0.0
    %92 = vmatprep.subr.mxu0 0.0
    %93 = vmatpush1.msra.mxu0 0.0
    %94 = vmatprep.subr.mxu0 0.0
    %95 = vmatpush1.msra.mxu0 0.0
    %96 = vmatprep.subr.mxu0 0.0
    %97 = vmatpush1.msra.mxu0 %v56
    %98 = vmatprep.subr.mxu0 0.0
    %99 = vmatpush1.msra.mxu0 %v55
    %100 = vmatprep.subr.mxu0 0.0
    %101 = vmatpush2.msra.mxu0 0.0
    %102 = vmatprep.subr.mxu0 0.0
    %103 = vmatpush2.msra.mxu0 0.0
    %104 = vmatprep.subr.mxu0 0.0
    %105 = vmatpush2.msra.mxu0 0.0
    %106 = vmatprep.subr.mxu0 0.0
    %107 = vmatpush2.msra.mxu0 0.0
    %108 = vmatprep.subr.mxu0 0.0
    %109 = vmatpush2.msra.mxu0 0.0
    %110 = vmatprep.subr.mxu0 0.0
    %111 = vmatpush2.msra.mxu0 0.0
    %112 = vmatprep.subr.mxu0 0.0
    %113 = vmatpush2.msra.mxu0 0.0
    %114 = vmatprep.subr.mxu0 0.0
    %115 = vmatpush2.msra.mxu0 0.0
    %116 = vmatprep.subr.mxu0 0.0
    %117 = vmatpush2.msra.mxu0 0.0
    %118 = vmatprep.subr.mxu0 0.0
    %119 = vmatpush2.msra.mxu0 0.0
    %120 = vmatprep.subr.mxu0 0.0
    %121 = vmatpush2.msra.mxu0 0.0
    %122 = vmatprep.subr.mxu0 0.0
    %123 = vmatpush2.msra.mxu0 0.0
    %124 = vmatprep.subr.mxu0 0.0
    %125 = vmatpush2.msra.mxu0 0.0
    %126 = vmatprep.subr.mxu0 0.0
    %127 = vmatpush2.msra.mxu0 0.0
    %128 = vmatprep.subr.mxu0 0.0
    %129 = vmatpush2.msra.mxu0 0.0
    %130 = vmatprep.subr.mxu0 0.0
    %131 = vmatpush2.msra.mxu0 0.0
    %132 = vmatprep.mubr.f32.mxu0 0.0
    %133 = vmatmul.mubr.f32.gmra.mxu0 %v66
    %v134 = vpop.f32.mrf.mxu0
    %v135 = vadd.f32 %v62, %v134
    %v136 = vpop.f32.mrf.mxu0
    %137 = vdwg.mxu0
    %v138 = vmax.f32 %v135, 0.0
    %v139 = vld [vmem:[#allocation2] sm:$0xff]
    %v140 = vld [vmem:[#allocation2 + $0x8] sm:$0xff]
    %v141 = vld [vmem:[#allocation2 + $0x10] sm:$0xff]
    %v142 = vld [vmem:[#allocation2 + $0x18] sm:$0xff]
    %v143 = vld [vmem:[#allocation2 + $0x20] sm:$0xff]
    %v144 = vld [vmem:[#allocation2 + $0x28] sm:$0xff]
    %v145 = vld [vmem:[#allocation2 + $0x30] sm:$0xff]
    %v146 = vld [vmem:[#allocation2 + $0x38] sm:$0xff]
    %v147 = vld [vmem:[#allocation2 + $0x40] sm:$0xff]
    %v148 = vld [vmem:[#allocation2 + $0x48] sm:$0xff]
    %v149 = vld [vmem:[#allocation2 + $0x50] sm:$0xff]
    %v150 = vld [vmem:[#allocation2 + $0x58] sm:$0xff]
    %v151 = vld [vmem:[#allocation2 + $0x60] sm:$0xff]
    %v152 = vld [vmem:[#allocation2 + $0x68] sm:$0xff]
    %v153 = vld [vmem:[#allocation2 + $0x70] sm:$0xff]
    %v154 = vld [vmem:[#allocation2 + $0x78] sm:$0xff]
    %v155 = vld [vmem:[%s4] sm:$0x1]
    %v157 = vlaneseq
    %v158 = vshrl.u32 %v157, 7
    %v159 = vsub.s32 0, %v158
    %v160 = vrot.slane %v155, %v159
    %162 = vmatprep.subr.mxu0 0.0
    %163 = vmatpush1.msra.mxu0 %v154
    %164 = vmatprep.subr.mxu0 0.0
    %165 = vmatpush1.msra.mxu0 %v153
    %166 = vmatprep.subr.mxu0 0.0
    %167 = vmatpush1.msra.mxu0 %v152
    %168 = vmatprep.subr.mxu0 0.0
    %169 = vmatpush1.msra.mxu0 %v151
    %170 = vmatprep.subr.mxu0 0.0
    %171 = vmatpush1.msra.mxu0 %v150
    %172 = vmatprep.subr.mxu0 0.0
    %173 = vmatpush1.msra.mxu0 %v149
    %174 = vmatprep.subr.mxu0 0.0
    %175 = vmatpush1.msra.mxu0 %v148
    %176 = vmatprep.subr.mxu0 0.0
    %177 = vmatpush1.msra.mxu0 %v147
    %178 = vmatprep.subr.mxu0 0.0
    %179 = vmatpush1.msra.mxu0 %v146
    %180 = vmatprep.subr.mxu0 0.0
    %181 = vmatpush1.msra.mxu0 %v145
    %182 = vmatprep.subr.mxu0 0.0
    %183 = vmatpush1.msra.mxu0 %v144
    %184 = vmatprep.subr.mxu0 0.0
    %185 = vmatpush1.msra.mxu0 %v143
    %186 = vmatprep.subr.mxu0 0.0
    %187 = vmatpush1.msra.mxu0 %v142
    %188 = vmatprep.subr.mxu0 0.0
    %189 = vmatpush1.msra.mxu0 %v141
    %190 = vmatprep.subr.mxu0 0.0
    %191 = vmatpush1.msra.mxu0 %v140
    %192 = vmatprep.subr.mxu0 0.0
    %193 = vmatpush1.msra.mxu0 %v139
    %194 = vmatprep.subr.mxu0 0.0
    %195 = vmatpush2.msra.mxu0 0.0
    %196 = vmatprep.subr.mxu0 0.0
    %197 = vmatpush2.msra.mxu0 0.0
    %198 = vmatprep.subr.mxu0 0.0
    %199 = vmatpush2.msra.mxu0 0.0
    %200 = vmatprep.subr.mxu0 0.0
    %201 = vmatpush2.msra.mxu0 0.0
    %202 = vmatprep.subr.mxu0 0.0
    %203 = vmatpush2.msra.mxu0 0.0
    %204 = vmatprep.subr.mxu0 0.0
    %205 = vmatpush2.msra.mxu0 0.0
    %206 = vmatprep.subr.mxu0 0.0
    %207 = vmatpush2.msra.mxu0 0.0
    %208 = vmatprep.subr.mxu0 0.0
    %209 = vmatpush2.msra.mxu0 0.0
    %210 = vmatprep.subr.mxu0 0.0
    %211 = vmatpush2.msra.mxu0 0.0
    %212 = vmatprep.subr.mxu0 0.0
    %213 = vmatpush2.msra.mxu0 0.0
    %214 = vmatprep.subr.mxu0 0.0
    %215 = vmatpush2.msra.mxu0 0.0
    %216 = vmatprep.subr.mxu0 0.0
    %217 = vmatpush2.msra.mxu0 0.0
    %218 = vmatprep.subr.mxu0 0.0
    %219 = vmatpush2.msra.mxu0 0.0
    %220 = vmatprep.subr.mxu0 0.0
    %221 = vmatpush2.msra.mxu0 0.0
    %222 = vmatprep.subr.mxu0 0.0
    %223 = vmatpush2.msra.mxu0 0.0
    %224 = vmatprep.subr.mxu0 0.0
    %225 = vmatpush2.msra.mxu0 0.0
    %226 = vmatprep.mubr.f32.mxu0 0.0
    %227 = vmatmul.mubr.f32.gmra.mxu0 %v138
    %v228 = vpop.f32.mrf.mxu0
    %v229 = vadd.f32 %v160, %v228
    %v230 = vpop.f32.mrf.mxu0
    %231 = vdwg.mxu0
    %v232 = vmax.f32 %v229, 0.0
    %v233 = vld [vmem:[#allocation4] sm:$0xff]
    %v234 = vld [vmem:[#allocation4 + $0x8] sm:$0xff]
    %v235 = vld [vmem:[#allocation4 + $0x10] sm:$0xff]
    %v236 = vld [vmem:[#allocation4 + $0x18] sm:$0xff]
    %v237 = vld [vmem:[#allocation4 + $0x20] sm:$0xff]
    %v238 = vld [vmem:[#allocation4 + $0x28] sm:$0xff]
    %v239 = vld [vmem:[#allocation4 + $0x30] sm:$0xff]
    %v240 = vld [vmem:[#allocation4 + $0x38] sm:$0xff]
    %v241 = vld [vmem:[#allocation4 + $0x40] sm:$0xff]
    %v242 = vld [vmem:[#allocation4 + $0x48] sm:$0xff]
    %v243 = vld [vmem:[#allocation4 + $0x50] sm:$0xff]
    %v244 = vld [vmem:[#allocation4 + $0x58] sm:$0xff]
    %v245 = vld [vmem:[#allocation4 + $0x60] sm:$0xff]
    %v246 = vld [vmem:[#allocation4 + $0x68] sm:$0xff]
    %v247 = vld [vmem:[#allocation4 + $0x70] sm:$0xff]
    %v248 = vld [vmem:[#allocation4 + $0x78] sm:$0xff]
    %v249 = vld [vmem:[%s6] sm:$0x1]
    %v251 = vlaneseq
    %v252 = vshrl.u32 %v251, 7
    %v253 = vsub.s32 0, %v252
    %v254 = vrot.slane %v249, %v253
    %256 = vmatprep.subr.mxu0 0.0
    %257 = vmatpush1.msra.mxu0 %v248
    %258 = vmatprep.subr.mxu0 0.0
    %259 = vmatpush1.msra.mxu0 %v247
    %260 = vmatprep.subr.mxu0 0.0
    %261 = vmatpush1.msra.mxu0 %v246
    %262 = vmatprep.subr.mxu0 0.0
    %263 = vmatpush1.msra.mxu0 %v245
    %264 = vmatprep.subr.mxu0 0.0
    %265 = vmatpush1.msra.mxu0 %v244
    %266 = vmatprep.subr.mxu0 0.0
    %267 = vmatpush1.msra.mxu0 %v243
    %268 = vmatprep.subr.mxu0 0.0
    %269 = vmatpush1.msra.mxu0 %v242
    %270 = vmatprep.subr.mxu0 0.0
    %271 = vmatpush1.msra.mxu0 %v241
    %272 = vmatprep.subr.mxu0 0.0
    %273 = vmatpush1.msra.mxu0 %v240
    %274 = vmatprep.subr.mxu0 0.0
    %275 = vmatpush1.msra.mxu0 %v239
    %276 = vmatprep.subr.mxu0 0.0
    %277 = vmatpush1.msra.mxu0 %v238
    %278 = vmatprep.subr.mxu0 0.0
    %279 = vmatpush1.msra.mxu0 %v237
    %280 = vmatprep.subr.mxu0 0.0
    %281 = vmatpush1.msra.mxu0 %v236
    %282 = vmatprep.subr.mxu0 0.0
    %283 = vmatpush1.msra.mxu0 %v235
    %284 = vmatprep.subr.mxu0 0.0
    %285 = vmatpush1.msra.mxu0 %v234
    %286 = vmatprep.subr.mxu0 0.0
    %287 = vmatpush1.msra.mxu0 %v233
    %288 = vmatprep.subr.mxu0 0.0
    %289 = vmatpush2.msra.mxu0 0.0
    %290 = vmatprep.subr.mxu0 0.0
    %291 = vmatpush2.msra.mxu0 0.0
    %292 = vmatprep.subr.mxu0 0.0
    %293 = vmatpush2.msra.mxu0 0.0
    %294 = vmatprep.subr.mxu0 0.0
    %295 = vmatpush2.msra.mxu0 0.0
    %296 = vmatprep.subr.mxu0 0.0
    %297 = vmatpush2.msra.mxu0 0.0
    %298 = vmatprep.subr.mxu0 0.0
    %299 = vmatpush2.msra.mxu0 0.0
    %300 = vmatprep.subr.mxu0 0.0
    %301 = vmatpush2.msra.mxu0 0.0
    %302 = vmatprep.subr.mxu0 0.0
    %303 = vmatpush2.msra.mxu0 0.0
    %304 = vmatprep.subr.mxu0 0.0
    %305 = vmatpush2.msra.mxu0 0.0
    %306 = vmatprep.subr.mxu0 0.0
    %307 = vmatpush2.msra.mxu0 0.0
    %308 = vmatprep.subr.mxu0 0.0
    %309 = vmatpush2.msra.mxu0 0.0
    %310 = vmatprep.subr.mxu0 0.0
    %311 = vmatpush2.msra.mxu0 0.0
    %312 = vmatprep.subr.mxu0 0.0
    %313 = vmatpush2.msra.mxu0 0.0
    %314 = vmatprep.subr.mxu0 0.0
    %315 = vmatpush2.msra.mxu0 0.0
    %316 = vmatprep.subr.mxu0 0.0
    %317 = vmatpush2.msra.mxu0 0.0
    %318 = vmatprep.subr.mxu0 0.0
    %319 = vmatpush2.msra.mxu0 0.0
    %320 = vmatprep.mubr.f32.mxu0 0.0
    %321 = vmatmul.mubr.f32.gmra.mxu0 %v232
    %v322 = vpop.f32.mrf.mxu0
    %v323 = vadd.f32 %v254, %v322
    %v324 = vpop.f32.mrf.mxu0
    %325 = vdwg.mxu0
    %vm326 = vcmask 64512
    %327 = vst.msk [vmem:[%s7] sm:$0xff] %vm326, %v323
    // Predicated region
    $region38: #{_lambda_.1} parent=1 // pred_check
      _
    $region39: #{_lambda_.1} parent=1 // pred_check_branch
      %329 = sbr.rel (0) target = $region41
    $region40: #{_lambda_.1} parent=1 // pred_region
      _
    $region41: #{_lambda_.1} parent=1 // pred_fallthru
      _
    // Predicated region
    $region42: #{_lambda_.1} parent=1 // pred_check
      _
    $region43: #{_lambda_.1} parent=1 // pred_check_branch
      %331 = sbr.rel (0) target = $region45
    $region44: #{_lambda_.1} parent=1 // pred_region
      _
    $region45: #{_lambda_.1} parent=1 // pred_fallthru
      _
    %332 = vsyncpa [#allocation3], 1
    %333 = vsyncpa [#allocation5], 1

</llo_original>
